<compile_context>
chip_gen: v7x
topology: tpu7x:2x2x1
jax: 0.10.0
libtpu: 0.0.40
codegen_flags: <defaults>
</compile_context>

<pallas_src>
import functools

import jax
import jax.numpy as jnp
from jax import lax
from jax.experimental import pallas as pl
from jax.experimental.pallas import tpu as pltpu

P_DROP = 0.3
# keep iff hash_i32 >= _KEEP_THRESH  ->  P(keep) = (2**31 - t) / 2**32 ~= 0.7
_KEEP_THRESH = -858993459
_LAYER_SALTS = (0, 1640531527, -1013904242)          # decorrelate the three dropout layers
_X_TILE_VMEM_BYTES = 8 * 1024 * 1024                 # per-buffer budget for the x tile


def _round_up(x, m):
    return ((x + m - 1) // m) * m


def _uniform_i32(shape, seed):
    """Per-element pseudo-random int32: murmur3-style finalizer over 2-D iota.

    Pure VPU integer ops (add/mul-wrap/xor/logical-shift) — no TPU HW PRNG — so it lowers
    on Mosaic and also runs under CPU interpret mode.
    """
    r = lax.broadcasted_iota(jnp.int32, shape, 0)
    c = lax.broadcasted_iota(jnp.int32, shape, 1)
    v = seed + r * jnp.int32(-1640531535) + c * jnp.int32(668265263)   # 0x9E3779B1, 0x27D4EB2F
    v = v ^ lax.shift_right_logical(v, 16)
    v = v * jnp.int32(-2048144789)                                     # 0x85EBCA6B
    v = v ^ lax.shift_right_logical(v, 13)
    v = v * jnp.int32(-1028477387)                                     # 0xC2B2AE35
    v = v ^ lax.shift_right_logical(v, 16)
    return v


def _mlp_body(x_ref, w0, b0, w1, b1, w2, b2, w3r, b3, o_ref, *, ew_dtype, dropout):
    f32 = jnp.float32

    def hidden(h_in, w, b, layer):
        # bf16 MXU inputs, f32 accumulation; bias added in f32; ReLU/dropout in ew_dtype.
        acc = jnp.dot(h_in.astype(jnp.bfloat16), w[...], preferred_element_type=f32)
        h = (acc + b[...]).astype(ew_dtype)
        return dropout(jnp.maximum(h, 0), layer)

    h = hidden(x_ref[...], w0, b0, 0)      # fc0 -> relu -> dropout
    h = hidden(h, w1, b1, 1)               # fc1 -> relu -> dropout
    h = hidden(h, w2, b2, 2)               # fc2 -> relu -> dropout

    # fc3 (64 -> 1): VPU multiply + lane reduction in f32 (keeps the MXU out of a 1-column
    # matmul), then the module's final ReLU.
    y = jnp.sum(h.astype(f32) * w3r[...], axis=-1, keepdims=True) + b3[...]
    y = jnp.maximum(y, 0.0)
    # Lane-dense store: flip the (TB, 1) column into one (1, 1, TB) row -> full-lane stores
    # and a contiguous writeback DMA.
    o_ref[...] = y.reshape(o_ref.shape).astype(o_ref.dtype)


def _net4_eval_kernel(x_ref, w0, b0, w1, b1, w2, b2, w3r, b3, o_ref, *, ew_dtype):
    _mlp_body(x_ref, w0, b0, w1, b1, w2, b2, w3r, b3, o_ref,
              ew_dtype=ew_dtype, dropout=lambda h, layer: h)


def _net4_train_kernel(seed_ref, x_ref, w0, b0, w1, b1, w2, b2, w3r, b3, o_ref, *, ew_dtype):
    # Per-tile stream so different batch tiles draw independent dropout masks.
    base = seed_ref[0] + pl.program_id(0) * jnp.int32(668265263)

    def dropout(h, layer):
        bits = _uniform_i32(h.shape, base + jnp.int32(_LAYER_SALTS[layer]))
        keep = (bits >= jnp.int32(_KEEP_THRESH)).astype(h.dtype)
        # The 1/(1-p) inverted-dropout scale is folded into the next layer's weights in the
        # wrapper, so only the binary mask multiply remains here.
        return h * keep

    _mlp_body(x_ref, w0, b0, w1, b1, w2, b2, w3r, b3, o_ref,
              ew_dtype=ew_dtype, dropout=dropout)


def _default_elementwise_dtype():
    # bf16 elementwise only helps (and only exists) on bf16-VPU chips (v6e / v7x).
    try:
        kind = jax.devices()[0].device_kind.lower()
    except Exception:
        return jnp.float32
    if "tpu" in kind and not any(f"v{n}" in kind for n in (2, 3, 4, 5)):
        return jnp.bfloat16
    return jnp.float32   # v5e (no bf16 VPU), CPU / interpret, unknown


def net4_forward(x, params, *, training=False, seed=0, block_b=1024, elementwise_dtype=None):
    """Fused Net4 forward. x: [B, n_feature] (f32, or bf16 from the caller to halve input
    HBM traffic). Returns [B, 1] in x.dtype."""
    w0, b0, w1, b1, w2, b2, w3, b3 = params
    B, F = x.shape
    if elementwise_dtype is None:
        elementwise_dtype = _default_elementwise_dtype()

    # ---- batch tiling -------------------------------------------------------
    B8 = _round_up(B, 8)
    # Cap TB so the double-buffered x stream stays <= ~16 MiB total: fits comfortably in
    # every generation's scoped VMEM (v7x: 64 MiB physical / 32 MiB scoped default).
    rows_cap = max(8, ((_X_TILE_VMEM_BYTES // max(1, F * x.dtype.itemsize)) // 8) * 8)
    TB = min(_round_up(block_b, 8), B8, rows_cap)
    # v7x has 2 TensorCores: keep >= 2 tiles on the "parallel" batch axis when B allows.
    if B8 // TB < 2 and B8 >= 16:
        TB = min(TB, _round_up(pl.cdiv(B8, 2), 8))
    B_pad = _round_up(B, TB)
    if B_pad != B:
        x = jnp.pad(x, ((0, B_pad - B), (0, 0)))
    G = B_pad // TB

    # ---- weight prep (one-time constant transforms, not per-tile work) -------
    if training:
        inv_keep = 1.0 / (1.0 - P_DROP)
        w1 = w1 * inv_keep   # dropout after fc0 feeds fc1
        w2 = w2 * inv_keep   # dropout after fc1 feeds fc2
        w3 = w3 * inv_keep   # dropout after fc2 feeds fc3
    w0b, w1b, w2b = (w.astype(jnp.bfloat16) for w in (w0, w1, w2))
    w3r = w3.reshape(1, -1).astype(jnp.float32)      # 64->1 layer stays f32 on the VPU
    b0r, b1r, b2r = (b.reshape(1, -1).astype(jnp.float32) for b in (b0, b1, b2))
    b3r = b3.reshape(1, 1).astype(jnp.float32)
    weights = (w0b, b0r, w1b, b1r, w2b, b2r, w3r, b3r)

    # ---- specs ---------------------------------------------------------------
    def batch_map(i, *_):
        return (i, 0)

    def const_map(i, *_):
        return (0, 0)

    x_spec = pl.BlockSpec((TB, F), batch_map)
    # NOTE: on newer JAX these constant blocks could take pipeline_mode=pl.Buffered(1) to
    # drop the redundant second buffer; omitted for version portability.
    w_specs = [pl.BlockSpec(w.shape, const_map) for w in weights]

    out_dtype = x.dtype
    out_spec = pl.BlockSpec((1, 1, TB), lambda i, *_: (i, 0, 0))
    out_shape = jax.ShapeDtypeStruct((G, 1, TB), out_dtype)

    flops = 2 * B_pad * (F * 64 + 64 * 128 + 128 * 64 + 64)
    bytes_accessed = int(
        B_pad * F * x.dtype.itemsize + B_pad * jnp.dtype(out_dtype).itemsize
        + sum(int(w.size) * w.dtype.itemsize for w in weights))
    cost = pl.CostEstimate(flops=flops, transcendentals=0, bytes_accessed=bytes_accessed)
    cparams = pltpu.CompilerParams(dimension_semantics=("parallel",))

    if training:
        kernel = functools.partial(_net4_train_kernel, ew_dtype=elementwise_dtype)
        grid_spec = pltpu.PrefetchScalarGridSpec(
            num_scalar_prefetch=1, grid=(G,),
            in_specs=[x_spec] + w_specs, out_specs=out_spec)
        out = pl.pallas_call(
            kernel, out_shape=out_shape, grid_spec=grid_spec,
            compiler_params=cparams, cost_estimate=cost,
        )(jnp.array([seed], jnp.int32), x, *weights)
    else:
        kernel = functools.partial(_net4_eval_kernel, ew_dtype=elementwise_dtype)
        grid_spec = pltpu.PrefetchScalarGridSpec(
            num_scalar_prefetch=0, grid=(G,),
            in_specs=[x_spec] + w_specs, out_specs=out_spec)
        out = pl.pallas_call(
            kernel, out_shape=out_shape, grid_spec=grid_spec,
            compiler_params=cparams, cost_estimate=cost,
        )(x, *weights)

    return out.reshape(B_pad, 1)[:B]


def init_params(key, n_feature, dtype=jnp.float32):
    """PyTorch-Linear-style init: U(-1/sqrt(fan_in), 1/sqrt(fan_in)); W stored [fin, fout]."""
    dims = [(n_feature, 64), (64, 128), (128, 64), (64, 1)]
    params = []
    for fin, fout in dims:
        key, kw, kb = jax.random.split(key, 3)
        bound = 1.0 / (fin ** 0.5)
        w = jax.random.uniform(kw, (fin, fout), dtype, -bound, bound)
        b = jax.random.uniform(kb, (1, fout), dtype, -bound, bound)
        params += [w, b]
    return params


def net4_reference(x, params):
    """Pure-JAX eval-mode (f32) reference."""
    w0, b0, w1, b1, w2, b2, w3, b3 = params
    h = jnp.maximum(x @ w0 + b0, 0.0)
    h = jnp.maximum(h @ w1 + b1, 0.0)
    h = jnp.maximum(h @ w2 + b2, 0.0)
    return jnp.maximum(h @ w3 + b3, 0.0)


if __name__ == "__main__":
    key = jax.random.PRNGKey(0)
    n_feature = 32
    batch = 64

    kp, kx = jax.random.split(key)
    params = init_params(kp, n_feature)
    x = jax.random.normal(kx, (batch, n_feature), jnp.float32)

    # Eval-mode forward through the fused Pallas kernel (2 batch tiles with the default
    # tiling -> exercises the pipelined/"parallel" batch axis).
    out = jax.block_until_ready(net4_forward(x, params, training=False))
    ref = net4_reference(x, params)
    assert out.shape == (batch, 1), out.shape
    # bf16 MXU inputs (and bf16 elementwise on v6e/v7x), f32 accumulation.
    assert jnp.allclose(out, ref, atol=3e-2, rtol=3e-2), (out, ref)

    # Ragged batch + multi-tile grid (exercises padding and the lane-dense output reshape).
    x2 = jax.random.normal(jax.random.PRNGKey(1), (50, n_feature), jnp.float32)
    out2 = jax.block_until_ready(net4_forward(x2, params, training=False, block_b=16))
    ref2 = net4_reference(x2, params)
    assert out2.shape == (50, 1), out2.shape
    assert jnp.allclose(out2, ref2, atol=3e-2, rtol=3e-2)

    # Training mode (inverted dropout: binary hash mask in-kernel, 1/(1-p) folded into
    # weights) — check it runs and is finite.
    out_tr = jax.block_until_ready(net4_forward(x, params, training=True, seed=123))
    assert out_tr.shape == (batch, 1), out_tr.shape
    assert bool(jnp.all(jnp.isfinite(out_tr)))

    print("KERNEL_OK")
</pallas_src>

<mosaic_0001>
module attributes {stable_mosaic.version = 11 : i64} {
  func.func @_net4_eval_kernel(%arg0: i32, %arg1: memref<32x32xf32, #tpu.memory_space<vmem>>, %arg2: memref<32x64xbf16, #tpu.memory_space<vmem>>, %arg3: memref<1x64xf32, #tpu.memory_space<vmem>>, %arg4: memref<64x128xbf16, #tpu.memory_space<vmem>>, %arg5: memref<1x128xf32, #tpu.memory_space<vmem>>, %arg6: memref<128x64xbf16, #tpu.memory_space<vmem>>, %arg7: memref<1x64xf32, #tpu.memory_space<vmem>>, %arg8: memref<1x64xf32, #tpu.memory_space<vmem>>, %arg9: memref<1x1xf32, #tpu.memory_space<vmem>>, %arg10: memref<1x1x32xf32, #tpu.memory_space<vmem>>) attributes {dimension_semantics = [#tpu.dimension_semantics<parallel>], iteration_bounds = array<i64: 2>, scalar_prefetch = 0 : i64, scratch_operands = 0 : i64, tpu.core_type = #tpu.core_type<tc>, window_params = [{transform_indices = @transform_0, window_bounds = array<i64: 32, 32>}, {pipeline_mode = #tpu.pipeline_mode<synchronous>, transform_indices = @transform_1, window_bounds = array<i64: 32, 64>}, {pipeline_mode = #tpu.pipeline_mode<synchronous>, transform_indices = @transform_2, window_bounds = array<i64: 1, 64>}, {pipeline_mode = #tpu.pipeline_mode<synchronous>, transform_indices = @transform_3, window_bounds = array<i64: 64, 128>}, {pipeline_mode = #tpu.pipeline_mode<synchronous>, transform_indices = @transform_4, window_bounds = array<i64: 1, 128>}, {pipeline_mode = #tpu.pipeline_mode<synchronous>, transform_indices = @transform_5, window_bounds = array<i64: 128, 64>}, {pipeline_mode = #tpu.pipeline_mode<synchronous>, transform_indices = @transform_6, window_bounds = array<i64: 1, 64>}, {pipeline_mode = #tpu.pipeline_mode<synchronous>, transform_indices = @transform_7, window_bounds = array<i64: 1, 64>}, {pipeline_mode = #tpu.pipeline_mode<synchronous>, transform_indices = @transform_8, window_bounds = array<i64: 1, 1>}, {transform_indices = @transform_9, window_bounds = array<i64: 1, 1, 32>}]} {
    %c0 = arith.constant 0 : index
    %c0_0 = arith.constant 0 : index
    %0 = vector.load %arg1[%c0, %c0_0] : memref<32x32xf32, #tpu.memory_space<vmem>>, vector<32x32xf32>
    %1 = arith.truncf %0 : vector<32x32xf32> to vector<32x32xbf16>
    %c0_1 = arith.constant 0 : index
    %c0_2 = arith.constant 0 : index
    %2 = vector.load %arg2[%c0_1, %c0_2] : memref<32x64xbf16, #tpu.memory_space<vmem>>, vector<32x64xbf16>
    %cst = arith.constant dense<0.000000e+00> : vector<32x64xf32>
    %3 = tpu.matmul %1, %2, %cst {dimension_numbers = #tpu.dot_dimension_numbers<[1], [0], [0], [1], [0, 0, 1, 1], [], []>} : vector<32x32xbf16>, vector<32x64xbf16>, vector<32x64xf32> -> vector<32x64xf32>
    %c0_3 = arith.constant 0 : index
    %c0_4 = arith.constant 0 : index
    %4 = vector.load %arg3[%c0_3, %c0_4] : memref<1x64xf32, #tpu.memory_space<vmem>>, vector<1x64xf32>
    %5 = vector.broadcast %4 : vector<1x64xf32> to vector<32x64xf32>
    %6 = arith.addf %3, %5 : vector<32x64xf32>
    %cst_5 = arith.constant 0.000000e+00 : f32
    %7 = vector.broadcast %cst_5 : f32 to vector<32x64xf32>
    %8 = arith.maximumf %6, %7 : vector<32x64xf32>
    %9 = arith.truncf %8 : vector<32x64xf32> to vector<32x64xbf16>
    %c0_6 = arith.constant 0 : index
    %c0_7 = arith.constant 0 : index
    %10 = vector.load %arg4[%c0_6, %c0_7] : memref<64x128xbf16, #tpu.memory_space<vmem>>, vector<64x128xbf16>
    %cst_8 = arith.constant dense<0.000000e+00> : vector<32x128xf32>
    %11 = tpu.matmul %9, %10, %cst_8 {dimension_numbers = #tpu.dot_dimension_numbers<[1], [0], [0], [1], [0, 0, 1, 1], [], []>} : vector<32x64xbf16>, vector<64x128xbf16>, vector<32x128xf32> -> vector<32x128xf32>
    %c0_9 = arith.constant 0 : index
    %c0_10 = arith.constant 0 : index
    %12 = vector.load %arg5[%c0_9, %c0_10] : memref<1x128xf32, #tpu.memory_space<vmem>>, vector<1x128xf32>
    %13 = vector.broadcast %12 : vector<1x128xf32> to vector<32x128xf32>
    %14 = arith.addf %11, %13 : vector<32x128xf32>
    %cst_11 = arith.constant 0.000000e+00 : f32
    %15 = vector.broadcast %cst_11 : f32 to vector<32x128xf32>
    %16 = arith.maximumf %14, %15 : vector<32x128xf32>
    %17 = arith.truncf %16 : vector<32x128xf32> to vector<32x128xbf16>
    %c0_12 = arith.constant 0 : index
    %c0_13 = arith.constant 0 : index
    %18 = vector.load %arg6[%c0_12, %c0_13] : memref<128x64xbf16, #tpu.memory_space<vmem>>, vector<128x64xbf16>
    %cst_14 = arith.constant dense<0.000000e+00> : vector<32x64xf32>
    %19 = tpu.matmul %17, %18, %cst_14 {dimension_numbers = #tpu.dot_dimension_numbers<[1], [0], [0], [1], [0, 0, 1, 1], [], []>} : vector<32x128xbf16>, vector<128x64xbf16>, vector<32x64xf32> -> vector<32x64xf32>
    %c0_15 = arith.constant 0 : index
    %c0_16 = arith.constant 0 : index
    %20 = vector.load %arg7[%c0_15, %c0_16] : memref<1x64xf32, #tpu.memory_space<vmem>>, vector<1x64xf32>
    %21 = vector.broadcast %20 : vector<1x64xf32> to vector<32x64xf32>
    %22 = arith.addf %19, %21 : vector<32x64xf32>
    %cst_17 = arith.constant 0.000000e+00 : f32
    %23 = vector.broadcast %cst_17 : f32 to vector<32x64xf32>
    %24 = arith.maximumf %22, %23 : vector<32x64xf32>
    %c0_18 = arith.constant 0 : index
    %c0_19 = arith.constant 0 : index
    %25 = vector.load %arg8[%c0_18, %c0_19] : memref<1x64xf32, #tpu.memory_space<vmem>>, vector<1x64xf32>
    %26 = vector.broadcast %25 : vector<1x64xf32> to vector<32x64xf32>
    %27 = arith.mulf %24, %26 : vector<32x64xf32>
    %cst_20 = arith.constant dense<0.000000e+00> : vector<32xf32>
    %28 = vector.multi_reduction <add>, %27, %cst_20 [1] : vector<32x64xf32> to vector<32xf32>
    %29 = vector.shape_cast %28 : vector<32xf32> to vector<32x1xf32>
    %c0_21 = arith.constant 0 : index
    %c0_22 = arith.constant 0 : index
    %30 = vector.load %arg9[%c0_21, %c0_22] : memref<1x1xf32, #tpu.memory_space<vmem>>, vector<1x1xf32>
    %31 = vector.broadcast %30 : vector<1x1xf32> to vector<32x1xf32>
    %32 = arith.addf %29, %31 : vector<32x1xf32>
    %cst_23 = arith.constant 0.000000e+00 : f32
    %33 = vector.broadcast %cst_23 : f32 to vector<32x1xf32>
    %34 = arith.maximumf %32, %33 : vector<32x1xf32>
    %35 = vector.shape_cast %34 : vector<32x1xf32> to vector<1x1x32xf32>
    %c0_24 = arith.constant 0 : index
    %c0_25 = arith.constant 0 : index
    %c0_26 = arith.constant 0 : index
    %36 = vector.load %arg10[%c0_24, %c0_25, %c0_26] : memref<1x1x32xf32, #tpu.memory_space<vmem>>, vector<1x1x32xf32>
    tpu.vector_store %arg10[%c0_24, %c0_25, %c0_26], %35 {strides = array<i32>} : memref<1x1x32xf32, #tpu.memory_space<vmem>>, vector<1x1x32xf32>,
    return
  }
  func.func @transform_0(%arg0: i32) -> (i32, i32) {
    %c0_i32 = arith.constant 0 : i32
    %c0_i32_0 = arith.constant 0 : i32
    return %arg0, %c0_i32 : i32, i32
  }
  func.func @transform_1(%arg0: i32) -> (i32, i32) {
    %c0_i32 = arith.constant 0 : i32
    %c0_i32_0 = arith.constant 0 : i32
    %c0_i32_1 = arith.constant 0 : i32
    return %c0_i32, %c0_i32_0 : i32, i32
  }
  func.func @transform_2(%arg0: i32) -> (i32, i32) {
    %c0_i32 = arith.constant 0 : i32
    %c0_i32_0 = arith.constant 0 : i32
    %c0_i32_1 = arith.constant 0 : i32
    return %c0_i32, %c0_i32_0 : i32, i32
  }
  func.func @transform_3(%arg0: i32) -> (i32, i32) {
    %c0_i32 = arith.constant 0 : i32
    %c0_i32_0 = arith.constant 0 : i32
    %c0_i32_1 = arith.constant 0 : i32
    return %c0_i32, %c0_i32_0 : i32, i32
  }
  func.func @transform_4(%arg0: i32) -> (i32, i32) {
    %c0_i32 = arith.constant 0 : i32
    %c0_i32_0 = arith.constant 0 : i32
    %c0_i32_1 = arith.constant 0 : i32
    return %c0_i32, %c0_i32_0 : i32, i32
  }
  func.func @transform_5(%arg0: i32) -> (i32, i32) {
    %c0_i32 = arith.constant 0 : i32
    %c0_i32_0 = arith.constant 0 : i32
    %c0_i32_1 = arith.constant 0 : i32
    return %c0_i32, %c0_i32_0 : i32, i32
  }
  func.func @transform_6(%arg0: i32) -> (i32, i32) {
    %c0_i32 = arith.constant 0 : i32
    %c0_i32_0 = arith.constant 0 : i32
    %c0_i32_1 = arith.constant 0 : i32
    return %c0_i32, %c0_i32_0 : i32, i32
  }
  func.func @transform_7(%arg0: i32) -> (i32, i32) {
    %c0_i32 = arith.constant 0 : i32
    %c0_i32_0 = arith.constant 0 : i32
    %c0_i32_1 = arith.constant 0 : i32
    return %c0_i32, %c0_i32_0 : i32, i32
  }
  func.func @transform_8(%arg0: i32) -> (i32, i32) {
    %c0_i32 = arith.constant 0 : i32
    %c0_i32_0 = arith.constant 0 : i32
    %c0_i32_1 = arith.constant 0 : i32
    return %c0_i32, %c0_i32_0 : i32, i32
  }
  func.func @transform_9(%arg0: i32) -> (i32, i32, i32) {
    %c0_i32 = arith.constant 0 : i32
    %c0_i32_0 = arith.constant 0 : i32
    %c0_i32_1 = arith.constant 0 : i32
    return %arg0, %c0_i32, %c0_i32_0 : i32, i32, i32
  }
}

</mosaic_0001>

<llo_original>
// kernel: tpu_custom_call.1
$region0: #{tpu_custom_call.1}
  #allocation0 [shape = 'u32[]', space=smem, size = 0x4, offset = 0x4, fixed_abs, tag = 'smem constant byte address 0x4 - core index']
  #allocation1 [shape = 'u32[144,128]{1,0:T(1,128)}', space=vmem, size = 0x12000, scoped, tag = 'internal scratch']
  #allocation2 [shape = 'f32[1,1]{1,0:T(1,128)S(1)}', space=vmem, size = 0x200, scoped, tag = 'scoped memory for tpu_custom_call.1']
  %s0 = inlined_call_operand.vmem [shape: f32[64,32], index: 0, kind: input, shape index: {}]
  %s1 = inlined_call_operand.vmem [shape: bf16[32,64], index: 1, kind: input, shape index: {}]
  %s2 = inlined_call_operand.vmem [shape: f32[1,64], index: 2, kind: input, shape index: {}]
  %s3 = inlined_call_operand.vmem [shape: bf16[64,128], index: 3, kind: input, shape index: {}]
  %s4 = inlined_call_operand.vmem [shape: f32[1,128], index: 4, kind: input, shape index: {}]
  %s5 = inlined_call_operand.vmem [shape: bf16[128,64], index: 5, kind: input, shape index: {}]
  %s6 = inlined_call_operand.vmem [shape: f32[1,64], index: 6, kind: input, shape index: {}]
  %s7 = inlined_call_operand.vmem [shape: f32[1,64], index: 7, kind: input, shape index: {}]
  %s8 = inlined_call_operand.<no memory space> [shape: f32[1,1], index: 8, kind: input, shape index: {}]
  %s9 = inlined_call_operand.hbm [shape: f32[2,1,32], index: 9, kind: output, shape index: {}]
  %s10 = sld [smem:[#allocation0]]
  $region69: #{tpu_custom_call.1} parent=0
    _
  %s12 = ssub.s32 1, %s10
  %s13 = scalar_select 0, %s12, %s10
  %v14 = vstv %s8
  %15 = vst [vmem:[#allocation2] sm:$0x1] %v14
  $region1: #{tpu_custom_call.1} parent=0
    #allocation3 [shape = 'u8[1024]{0}', space=vmem, size = 0x400, scoped, tag = 'output window, operand 0']
    #allocation4 [shape = 's32[2]{0}', space=sflag, size = 0x8, scoped, tag = 'scoped memory for tpu_custom_call.1']
    %16 = vsyncpa [#allocation4], 0
    %s17 = scalar_lea.sflag [#allocation4], 1
    %18 = vsyncpa %s17, 0
    loop: start=0, step=1, limit=4
    $region2: #{tpu_custom_call.1} parent=1 // loop_pre_header
      _
    $region3: #{tpu_custom_call.1} parent=1 // loop_header
      %s20 = sphi 0, %s24
      %p21 = scmp.ge.s32.totalorder %s20, 4
      %s30 = sphi 0, %s32
      %s33 = sphi 0, %s30
      %s34 = sphi 0, %s33
      %s50 = sphi 0, %s34
      %s54 = sphi 0, %s54
      %s56 = sphi 0, %s54
      %s57 = sphi 0, %s56
      %s71 = sphi 0, %s57
      %s75 = sphi 0, %s75
      %s77 = sphi 0, %s75
      %s78 = sphi 0, %s77
      %s92 = sphi 0, %s78
      %s96 = sphi 0, %s96
      %s98 = sphi 0, %s96
      %s99 = sphi 0, %s98
      %s113 = sphi 0, %s99
      %s117 = sphi 0, %s117
      %s119 = sphi 0, %s117
      %s120 = sphi 0, %s119
      %s134 = sphi 0, %s120
      %s138 = sphi 0, %s138
      %s140 = sphi 0, %s138
      %s141 = sphi 0, %s140
      %s155 = sphi 0, %s141
      %s159 = sphi 0, %s159
      %s161 = sphi 0, %s159
      %s162 = sphi 0, %s161
      %s176 = sphi 0, %s162
      %s180 = sphi 0, %s180
      %s182 = sphi 0, %s180
      %s183 = sphi 0, %s182
      %s197 = sphi 0, %s183
      %s201 = sphi 0, %s201
      %s203 = sphi 0, %s201
      %s204 = sphi 0, %s203
      %s218 = sphi 0, %s204
      %s224 = sphi 0, %s226
      %s227 = sphi 0, %s224
      %s228 = sphi 0, %s227
      %s244 = sphi 0, %s228
    $region4: #{tpu_custom_call.1} parent=1 // loop_header_branch
      %23 = sbr.rel (%p21) target = $region8
    $region5: #{tpu_custom_call.1} parent=1 // loop_body
      %s25 = ssub.s32 %s20, 1
      %s26 = ssub.s32 %s20, 2
      %s27 = sadd.s32 %s20, 1
      %s28 = ssub.s32 %s20, %s27
      %p29 = scmp.eq.s32.totalorder %s28, 0
      %s31 = sadd.s32 %s30, 1
      %s32 = scalar_select %p29, %s30, %s31
      %p35 = pneg %p29
      %p36 = scmp.eq.s32.totalorder %s20, 1
      %p37 = por %p35, %p36
      %p38 = scmp.ne.s32.totalorder %s30, %s33
      %p39 = scmp.eq.s32.totalorder %s20, 0
      %p40 = por %p38, %p39
      %p41 = scmp.ne.s32.totalorder %s30, %s33
      %p42 = scmp.eq.s32.totalorder %s25, 1
      %p43 = por %p41, %p42
      %p44 = scmp.ne.s32.totalorder %s33, %s34
      %p45 = scmp.eq.s32.totalorder %s25, 0
      %p46 = por %p44, %p45
      %p47 = scmp.ne.s32.totalorder %s33, %s34
      %p48 = scmp.eq.s32.totalorder %s26, 1
      %p49 = por %p47, %p48
      %p51 = scmp.ne.s32.totalorder %s34, %s50
      %p52 = scmp.eq.s32.totalorder %s26, 0
      %p53 = por %p51, %p52
      %s55 = sadd.s32 %s54, 1
      %p58 = scmp.eq.s32.totalorder %s20, 1
      %p59 = scmp.ne.s32.totalorder %s54, %s56
      %p60 = scmp.eq.s32.totalorder %s20, 0
      %p61 = por %p59, %p60
      %p62 = scmp.ne.s32.totalorder %s54, %s56
      %p63 = scmp.eq.s32.totalorder %s25, 1
      %p64 = por %p62, %p63
      %p65 = scmp.ne.s32.totalorder %s56, %s57
      %p66 = scmp.eq.s32.totalorder %s25, 0
      %p67 = por %p65, %p66
      %p68 = scmp.ne.s32.totalorder %s56, %s57
      %p69 = scmp.eq.s32.totalorder %s26, 1
      %p70 = por %p68, %p69
      %p72 = scmp.ne.s32.totalorder %s57, %s71
      %p73 = scmp.eq.s32.totalorder %s26, 0
      %p74 = por %p72, %p73
      %s76 = sadd.s32 %s75, 1
      %p79 = scmp.eq.s32.totalorder %s20, 1
      %p80 = scmp.ne.s32.totalorder %s75, %s77
      %p81 = scmp.eq.s32.totalorder %s20, 0
      %p82 = por %p80, %p81
      %p83 = scmp.ne.s32.totalorder %s75, %s77
      %p84 = scmp.eq.s32.totalorder %s25, 1
      %p85 = por %p83, %p84
      %p86 = scmp.ne.s32.totalorder %s77, %s78
      %p87 = scmp.eq.s32.totalorder %s25, 0
      %p88 = por %p86, %p87
      %p89 = scmp.ne.s32.totalorder %s77, %s78
      %p90 = scmp.eq.s32.totalorder %s26, 1
      %p91 = por %p89, %p90
      %p93 = scmp.ne.s32.totalorder %s78, %s92
      %p94 = scmp.eq.s32.totalorder %s26, 0
      %p95 = por %p93, %p94
      %s97 = sadd.s32 %s96, 1
      %p100 = scmp.eq.s32.totalorder %s20, 1
      %p101 = scmp.ne.s32.totalorder %s96, %s98
      %p102 = scmp.eq.s32.totalorder %s20, 0
      %p103 = por %p101, %p102
      %p104 = scmp.ne.s32.totalorder %s96, %s98
      %p105 = scmp.eq.s32.totalorder %s25, 1
      %p106 = por %p104, %p105
      %p107 = scmp.ne.s32.totalorder %s98, %s99
      %p108 = scmp.eq.s32.totalorder %s25, 0
      %p109 = por %p107, %p108
      %p110 = scmp.ne.s32.totalorder %s98, %s99
      %p111 = scmp.eq.s32.totalorder %s26, 1
      %p112 = por %p110, %p111
      %p114 = scmp.ne.s32.totalorder %s99, %s113
      %p115 = scmp.eq.s32.totalorder %s26, 0
      %p116 = por %p114, %p115
      %s118 = sadd.s32 %s117, 1
      %p121 = scmp.eq.s32.totalorder %s20, 1
      %p122 = scmp.ne.s32.totalorder %s117, %s119
      %p123 = scmp.eq.s32.totalorder %s20, 0
      %p124 = por %p122, %p123
      %p125 = scmp.ne.s32.totalorder %s117, %s119
      %p126 = scmp.eq.s32.totalorder %s25, 1
      %p127 = por %p125, %p126
      %p128 = scmp.ne.s32.totalorder %s119, %s120
      %p129 = scmp.eq.s32.totalorder %s25, 0
      %p130 = por %p128, %p129
      %p131 = scmp.ne.s32.totalorder %s119, %s120
      %p132 = scmp.eq.s32.totalorder %s26, 1
      %p133 = por %p131, %p132
      %p135 = scmp.ne.s32.totalorder %s120, %s134
      %p136 = scmp.eq.s32.totalorder %s26, 0
      %p137 = por %p135, %p136
      %s139 = sadd.s32 %s138, 1
      %p142 = scmp.eq.s32.totalorder %s20, 1
      %p143 = scmp.ne.s32.totalorder %s138, %s140
      %p144 = scmp.eq.s32.totalorder %s20, 0
      %p145 = por %p143, %p144
      %p146 = scmp.ne.s32.totalorder %s138, %s140
      %p147 = scmp.eq.s32.totalorder %s25, 1
      %p148 = por %p146, %p147
      %p149 = scmp.ne.s32.totalorder %s140, %s141
      %p150 = scmp.eq.s32.totalorder %s25, 0
      %p151 = por %p149, %p150
      %p152 = scmp.ne.s32.totalorder %s140, %s141
      %p153 = scmp.eq.s32.totalorder %s26, 1
      %p154 = por %p152, %p153
      %p156 = scmp.ne.s32.totalorder %s141, %s155
      %p157 = scmp.eq.s32.totalorder %s26, 0
      %p158 = por %p156, %p157
      %s160 = sadd.s32 %s159, 1
      %p163 = scmp.eq.s32.totalorder %s20, 1
      %p164 = scmp.ne.s32.totalorder %s159, %s161
      %p165 = scmp.eq.s32.totalorder %s20, 0
      %p166 = por %p164, %p165
      %p167 = scmp.ne.s32.totalorder %s159, %s161
      %p168 = scmp.eq.s32.totalorder %s25, 1
      %p169 = por %p167, %p168
      %p170 = scmp.ne.s32.totalorder %s161, %s162
      %p171 = scmp.eq.s32.totalorder %s25, 0
      %p172 = por %p170, %p171
      %p173 = scmp.ne.s32.totalorder %s161, %s162
      %p174 = scmp.eq.s32.totalorder %s26, 1
      %p175 = por %p173, %p174
      %p177 = scmp.ne.s32.totalorder %s162, %s176
      %p178 = scmp.eq.s32.totalorder %s26, 0
      %p179 = por %p177, %p178
      %s181 = sadd.s32 %s180, 1
      %p184 = scmp.eq.s32.totalorder %s20, 1
      %p185 = scmp.ne.s32.totalorder %s180, %s182
      %p186 = scmp.eq.s32.totalorder %s20, 0
      %p187 = por %p185, %p186
      %p188 = scmp.ne.s32.totalorder %s180, %s182
      %p189 = scmp.eq.s32.totalorder %s25, 1
      %p190 = por %p188, %p189
      %p191 = scmp.ne.s32.totalorder %s182, %s183
      %p192 = scmp.eq.s32.totalorder %s25, 0
      %p193 = por %p191, %p192
      %p194 = scmp.ne.s32.totalorder %s182, %s183
      %p195 = scmp.eq.s32.totalorder %s26, 1
      %p196 = por %p194, %p195
      %p198 = scmp.ne.s32.totalorder %s183, %s197
      %p199 = scmp.eq.s32.totalorder %s26, 0
      %p200 = por %p198, %p199
      %s202 = sadd.s32 %s201, 1
      %p205 = scmp.eq.s32.totalorder %s20, 1
      %p206 = scmp.ne.s32.totalorder %s201, %s203
      %p207 = scmp.eq.s32.totalorder %s20, 0
      %p208 = por %p206, %p207
      %p209 = scmp.ne.s32.totalorder %s201, %s203
      %p210 = scmp.eq.s32.totalorder %s25, 1
      %p211 = por %p209, %p210
      %p212 = scmp.ne.s32.totalorder %s203, %s204
      %p213 = scmp.eq.s32.totalorder %s25, 0
      %p214 = por %p212, %p213
      %p215 = scmp.ne.s32.totalorder %s203, %s204
      %p216 = scmp.eq.s32.totalorder %s26, 1
      %p217 = por %p215, %p216
      %p219 = scmp.ne.s32.totalorder %s204, %s218
      %p220 = scmp.eq.s32.totalorder %s26, 0
      %p221 = por %p219, %p220
      %s222 = ssub.s32 %s20, %s27
      %p223 = scmp.eq.s32.totalorder %s222, 0
      %s225 = sadd.s32 %s224, 1
      %s226 = scalar_select %p223, %s224, %s225
      %p229 = pneg %p223
      %p230 = scmp.eq.s32.totalorder %s20, 1
      %p231 = por %p229, %p230
      %p232 = scmp.ne.s32.totalorder %s224, %s227
      %p233 = scmp.eq.s32.totalorder %s20, 0
      %p234 = por %p232, %p233
      %p235 = scmp.ne.s32.totalorder %s224, %s227
      %p236 = scmp.eq.s32.totalorder %s25, 1
      %p237 = por %p235, %p236
      %p238 = scmp.ne.s32.totalorder %s227, %s228
      %p239 = scmp.eq.s32.totalorder %s25, 0
      %p240 = por %p238, %p239
      %p241 = scmp.ne.s32.totalorder %s227, %s228
      %p242 = scmp.eq.s32.totalorder %s26, 1
      %p243 = por %p241, %p242
      %p245 = scmp.ne.s32.totalorder %s228, %s244
      %p246 = scmp.eq.s32.totalorder %s26, 0
      %p247 = por %p245, %p246
      %p248 = scmp.le.s32.totalorder 1, %s20
      %p249 = scmp.lt.s32.totalorder %s20, 3
      %p250 = pnand %p248, %p249
      %p251 = pneg %p250
      // Predicated region
      $region9: #{tpu_custom_call.1} parent=5 // pred_check
        _
      $region10: #{tpu_custom_call.1} parent=5 // pred_check_branch
        %253 = sbr.rel (%p250) target = $region12
      $region11: #{tpu_custom_call.1} parent=5 // pred_region
        %s254 = ssub.s32 %s20, 1
        // Predicated region
        $region13: #{tpu_custom_call.1} parent=11 // pred_check
          %p255 = pneg %p67
        $region14: #{tpu_custom_call.1} parent=11 // pred_check_branch
          %257 = sbr.rel (%p255) target = $region16
        $region15: #{tpu_custom_call.1} parent=11 // pred_region
          _
        $region16: #{tpu_custom_call.1} parent=11 // pred_fallthru
          _
        // Predicated region
        $region17: #{tpu_custom_call.1} parent=11 // pred_check
          %p258 = pneg %p88
        $region18: #{tpu_custom_call.1} parent=11 // pred_check_branch
          %260 = sbr.rel (%p258) target = $region20
        $region19: #{tpu_custom_call.1} parent=11 // pred_region
          _
        $region20: #{tpu_custom_call.1} parent=11 // pred_fallthru
          _
        // Predicated region
        $region21: #{tpu_custom_call.1} parent=11 // pred_check
          %p261 = pneg %p109
        $region22: #{tpu_custom_call.1} parent=11 // pred_check_branch
          %263 = sbr.rel (%p261) target = $region24
        $region23: #{tpu_custom_call.1} parent=11 // pred_region
          _
        $region24: #{tpu_custom_call.1} parent=11 // pred_fallthru
          _
        // Predicated region
        $region25: #{tpu_custom_call.1} parent=11 // pred_check
          %p264 = pneg %p130
        $region26: #{tpu_custom_call.1} parent=11 // pred_check_branch
          %266 = sbr.rel (%p264) target = $region28
        $region27: #{tpu_custom_call.1} parent=11 // pred_region
          _
        $region28: #{tpu_custom_call.1} parent=11 // pred_fallthru
          _
        // Predicated region
        $region29: #{tpu_custom_call.1} parent=11 // pred_check
          %p267 = pneg %p151
        $region30: #{tpu_custom_call.1} parent=11 // pred_check_branch
          %269 = sbr.rel (%p267) target = $region32
        $region31: #{tpu_custom_call.1} parent=11 // pred_region
          _
        $region32: #{tpu_custom_call.1} parent=11 // pred_fallthru
          _
        // Predicated region
        $region33: #{tpu_custom_call.1} parent=11 // pred_check
          %p270 = pneg %p172
        $region34: #{tpu_custom_call.1} parent=11 // pred_check_branch
          %272 = sbr.rel (%p270) target = $region36
        $region35: #{tpu_custom_call.1} parent=11 // pred_region
          _
        $region36: #{tpu_custom_call.1} parent=11 // pred_fallthru
          _
        // Predicated region
        $region37: #{tpu_custom_call.1} parent=11 // pred_check
          %p273 = pneg %p193
        $region38: #{tpu_custom_call.1} parent=11 // pred_check_branch
          %275 = sbr.rel (%p273) target = $region40
        $region39: #{tpu_custom_call.1} parent=11 // pred_region
          _
        $region40: #{tpu_custom_call.1} parent=11 // pred_fallthru
          _
        // Predicated region
        $region41: #{tpu_custom_call.1} parent=11 // pred_check
          %p276 = pneg %p214
        $region42: #{tpu_custom_call.1} parent=11 // pred_check_branch
          %278 = sbr.rel (%p276) target = $region44
        $region43: #{tpu_custom_call.1} parent=11 // pred_region
          _
        $region44: #{tpu_custom_call.1} parent=11 // pred_fallthru
          _
      $region12: #{tpu_custom_call.1} parent=5 // pred_fallthru
        _
      %p279 = scmp.lt.s32.totalorder %s20, 2
      // Predicated region
      $region45: #{tpu_custom_call.1} parent=5 // pred_check
        %p280 = pneg %p279
      $region46: #{tpu_custom_call.1} parent=5 // pred_check_branch
        %282 = sbr.rel (%p280) target = $region48
      $region47: #{tpu_custom_call.1} parent=5 // pred_region
        // Predicated region
        $region49: #{tpu_custom_call.1} parent=47 // pred_check
          %p283 = pneg %p40
        $region50: #{tpu_custom_call.1} parent=47 // pred_check_branch
          %285 = sbr.rel (%p283) target = $region52
        $region51: #{tpu_custom_call.1} parent=47 // pred_region
          %s286 = smul.u32 4, %s20
          %p287 = scmp.lt.s32.totalorder %s286, 7
          %s288 = scalar_select %p287, %s286, 7
          %s289 = smul.addr %s288, 8
          %s290 = scalar_lea.vmem %s0, %s289
          %s291 = smul.u32 4, %s20
        $region52: #{tpu_custom_call.1} parent=47 // pred_fallthru
          _
      $region48: #{tpu_custom_call.1} parent=5 // pred_fallthru
        _
      %p292 = scmp.le.s32.totalorder 1, %s20
      %p293 = scmp.lt.s32.totalorder %s20, 3
      %p294 = pnand %p292, %p293
      %p295 = pneg %p294
      // Predicated region
      $region53: #{tpu_custom_call.1} parent=5 // pred_check
        _
      $region54: #{tpu_custom_call.1} parent=5 // pred_check_branch
        %297 = sbr.rel (%p294) target = $region56
      $region55: #{tpu_custom_call.1} parent=5 // pred_region
        %s298 = ssub.s32 %s20, 1
        %s299 = smul.u32 4, %s25
        %p300 = scmp.lt.s32.totalorder %s299, 7
        %s301 = scalar_select %p300, %s299, 7
        %s302 = smul.addr %s301, 8
        %s303 = scalar_lea.vmem %s0, %s302
        %p304 = pneg %p46
        %p305 = pneg %p43
        %p306 = pneg %p67
        %p307 = pneg %p64
        %p308 = pneg %p88
        %p309 = pneg %p85
        %p310 = pneg %p109
        %p311 = pneg %p106
        %p312 = pneg %p130
        %p313 = pneg %p127
        %p314 = pneg %p151
        %p315 = pneg %p148
        %p316 = pneg %p172
        %p317 = pneg %p169
        %p318 = pneg %p193
        %p319 = pneg %p190
        %p320 = pneg %p214
        %p321 = pneg %p211
        %p322 = pneg %p240
        %p323 = pneg %p237
        %s324 = sand.u32 %s227, 1
        %s325 = scalar_lea.sflag [#allocation4], %s324
        %s326 = sand.u32 %s227, 1
        %s327 = scalar_lea.vmem [#allocation3], %s326
        %s328 = smul.u32 4, %s25
        %p329 = scmp.lt.s32.totalorder %s328, 7
        %s330 = scalar_select %p329, %s328, 7
        %s331 = smul.addr %s330, 8
        %s332 = scalar_lea.vmem %s0, %s331
        %s333 = smul.u32 4, %s25
        %v335 = vld [vmem:[%s332] sm:$0xff]
        %v336 = vld [vmem:[%s332 + $0x8] sm:$0xff]
        %v337 = vld [vmem:[%s332 + $0x10] sm:$0xff]
        %v338 = vld [vmem:[%s332 + $0x18] sm:$0xff]
        %v339 = vpack.c.bf16 %v336, %v335
        %v340 = vpack.c.bf16 %v338, %v337
        %v341 = vld [vmem:[%s1] sm:$0xf]
        %v342 = vld [vmem:[%s1 + $0x4] sm:$0xf]
        %v343 = vld [vmem:[%s1 + $0x8] sm:$0xf]
        %v344 = vld [vmem:[%s1 + $0xc] sm:$0xf]
        %v345 = vld [vmem:[%s2] sm:$0x1]
        %v347 = vlaneseq
        %v348 = vshrl.u32 %v347, 7
        %v349 = vsub.s32 0, %v348
        %v350 = vrot.slane %v345, %v349
        %v356 = vunpack.c.l.b16 %v341
        %v357 = vunpack.c.l.b16 %v342
        %v358 = vunpack.c.l.b16 %v343
        %v359 = vunpack.c.l.b16 %v344
        %v360 = vpack.c.b16 %v357, %v356
        %v361 = vpack.c.b16 %v359, %v358
        %vm364 = vcmask 261120
        %v366 = vsel %vm364, %v339, 0
        %v369 = vsel %vm364, %v340, 0
        %371 = vmatprep.subr.bf16.mxu0 0
        %372 = vmatpush1.bf16.msra.mxu0 %v360
        %373 = vmatprep.subr.bf16.mxu0 0
        %374 = vmatpush1.bf16.msra.mxu0 %v361
        %375 = vmatprep.subr.bf16.mxu0 0
        %376 = vmatpush1.bf16.msra.mxu0 0
        %377 = vmatprep.subr.bf16.mxu0 0
        %378 = vmatpush1.bf16.msra.mxu0 0
        %379 = vmatprep.subr.bf16.mxu0 0
        %380 = vmatpush1.bf16.msra.mxu0 0
        %381 = vmatprep.subr.bf16.mxu0 0
        %382 = vmatpush1.bf16.msra.mxu0 0
        %383 = vmatprep.subr.bf16.mxu0 0
        %384 = vmatpush1.bf16.msra.mxu0 0
        %385 = vmatprep.subr.bf16.mxu0 0
        %386 = vmatpush1.bf16.msra.mxu0 0
        %387 = vmatprep.subr.bf16.mxu0 0
        %388 = vmatpush1.bf16.msra.mxu0 0
        %389 = vmatprep.subr.bf16.mxu0 0
        %390 = vmatpush1.bf16.msra.mxu0 0
        %391 = vmatprep.subr.bf16.mxu0 0
        %392 = vmatpush1.bf16.msra.mxu0 0
        %393 = vmatprep.subr.bf16.mxu0 0
        %394 = vmatpush1.bf16.msra.mxu0 0
        %395 = vmatprep.subr.bf16.mxu0 0
        %396 = vmatpush1.bf16.msra.mxu0 0
        %397 = vmatprep.subr.bf16.mxu0 0
        %398 = vmatpush1.bf16.msra.mxu0 0
        %399 = vmatprep.subr.bf16.mxu0 0
        %400 = vmatpush1.bf16.msra.mxu0 0
        %401 = vmatprep.subr.bf16.mxu0 0
        %402 = vmatpush1.bf16.msra.mxu0 0
        %403 = vmatprep.mubr.bf16.mxu0 0
        %404 = vmatmul.mubr.bf16.gmra.mrb[0].mxu0 %v366
        %v405 = vpop.f32.mrb[0].mxu0
        %v406 = vadd.f32 %v350, %v405
        %v407 = vpop.f32.mrb[0].mxu0
        %v408 = vpop.f32.mrb[0].mxu0
        %v409 = vadd.f32 %v350, %v408
        %v410 = vpop.f32.mrb[0].mxu0
        %411 = vmatprep.mubr.bf16.mxu0 0
        %412 = vmatmul.mubr.bf16.gmra.mrb[0].mxu0 %v369
        %v413 = vpop.f32.mrb[0].mxu0
        %v414 = vadd.f32 %v350, %v413
        %v415 = vpop.f32.mrb[0].mxu0
        %v416 = vpop.f32.mrb[0].mxu0
        %v417 = vadd.f32 %v350, %v416
        %v418 = vpop.f32.mrb[0].mxu0
        %419 = vdwg.mxu0
        %v420 = vmax.f32 %v406, 0.0
        %v421 = vmax.f32 %v409, 0.0
        %v422 = vmax.f32 %v414, 0.0
        %v423 = vmax.f32 %v417, 0.0
        %v424 = vpack.c.bf16 %v421, %v420
        %v425 = vpack.c.bf16 %v423, %v422
        %v426 = vld [vmem:[%s3] sm:$0xf]
        %v427 = vld [vmem:[%s3 + $0x4] sm:$0xf]
        %v428 = vld [vmem:[%s3 + $0x8] sm:$0xf]
        %v429 = vld [vmem:[%s3 + $0xc] sm:$0xf]
        %v430 = vld [vmem:[%s3 + $0x10] sm:$0xf]
        %v431 = vld [vmem:[%s3 + $0x14] sm:$0xf]
        %v432 = vld [vmem:[%s3 + $0x18] sm:$0xf]
        %v433 = vld [vmem:[%s3 + $0x1c] sm:$0xf]
        %v434 = vld [vmem:[%s4] sm:$0x1]
        %v436 = vlaneseq
        %v437 = vshrl.u32 %v436, 7
        %v438 = vsub.s32 0, %v437
        %v439 = vrot.slane %v434, %v438
        %v449 = vunpack.c.l.b16 %v426
        %v450 = vunpack.c.l.b16 %v427
        %v451 = vunpack.c.l.b16 %v428
        %v452 = vunpack.c.l.b16 %v429
        %v453 = vunpack.c.l.b16 %v430
        %v454 = vunpack.c.l.b16 %v431
        %v455 = vunpack.c.l.b16 %v432
        %v456 = vunpack.c.l.b16 %v433
        %v457 = vpack.c.b16 %v450, %v449
        %v458 = vpack.c.b16 %v452, %v451
        %v459 = vpack.c.b16 %v454, %v453
        %v460 = vpack.c.b16 %v456, %v455
        %vm465 = vcmask 523264
        %v467 = vsel %vm465, %v424, 0
        %v470 = vsel %vm465, %v425, 0
        %472 = vmatprep.subr.bf16.mxu0 0
        %473 = vmatpush1.bf16.msra.mxu0 %v457
        %474 = vmatprep.subr.bf16.mxu0 0
        %475 = vmatpush1.bf16.msra.mxu0 %v458
        %476 = vmatprep.subr.bf16.mxu0 0
        %477 = vmatpush1.bf16.msra.mxu0 %v459
        %478 = vmatprep.subr.bf16.mxu0 0
        %479 = vmatpush1.bf16.msra.mxu0 %v460
        %480 = vmatprep.subr.bf16.mxu0 0
        %481 = vmatpush1.bf16.msra.mxu0 0
        %482 = vmatprep.subr.bf16.mxu0 0
        %483 = vmatpush1.bf16.msra.mxu0 0
        %484 = vmatprep.subr.bf16.mxu0 0
        %485 = vmatpush1.bf16.msra.mxu0 0
        %486 = vmatprep.subr.bf16.mxu0 0
        %487 = vmatpush1.bf16.msra.mxu0 0
        %488 = vmatprep.subr.bf16.mxu0 0
        %489 = vmatpush1.bf16.msra.mxu0 0
        %490 = vmatprep.subr.bf16.mxu0 0
        %491 = vmatpush1.bf16.msra.mxu0 0
        %492 = vmatprep.subr.bf16.mxu0 0
        %493 = vmatpush1.bf16.msra.mxu0 0
        %494 = vmatprep.subr.bf16.mxu0 0
        %495 = vmatpush1.bf16.msra.mxu0 0
        %496 = vmatprep.subr.bf16.mxu0 0
        %497 = vmatpush1.bf16.msra.mxu0 0
        %498 = vmatprep.subr.bf16.mxu0 0
        %499 = vmatpush1.bf16.msra.mxu0 0
        %500 = vmatprep.subr.bf16.mxu0 0
        %501 = vmatpush1.bf16.msra.mxu0 0
        %502 = vmatprep.subr.bf16.mxu0 0
        %503 = vmatpush1.bf16.msra.mxu0 0
        %504 = vmatprep.mubr.bf16.mxu0 0
        %505 = vmatmul.mubr.bf16.gmra.mrb[0].mxu0 %v467
        %v506 = vpop.f32.mrb[0].mxu0
        %v507 = vadd.f32 %v439, %v506
        %v508 = vpop.f32.mrb[0].mxu0
        %v509 = vpop.f32.mrb[0].mxu0
        %v510 = vadd.f32 %v439, %v509
        %v511 = vpop.f32.mrb[0].mxu0
        %512 = vmatprep.mubr.bf16.mxu0 0
        %513 = vmatmul.mubr.bf16.gmra.mrb[0].mxu0 %v470
        %v514 = vpop.f32.mrb[0].mxu0
        %v515 = vadd.f32 %v439, %v514
        %v516 = vpop.f32.mrb[0].mxu0
        %v517 = vpop.f32.mrb[0].mxu0
        %v518 = vadd.f32 %v439, %v517
        %v519 = vpop.f32.mrb[0].mxu0
        %520 = vdwg.mxu0
        %v521 = vmax.f32 %v507, 0.0
        %v522 = vmax.f32 %v510, 0.0
        %v523 = vmax.f32 %v515, 0.0
        %v524 = vmax.f32 %v518, 0.0
        %v525 = vpack.c.bf16 %v522, %v521
        %v526 = vpack.c.bf16 %v524, %v523
        %v527 = vld [vmem:[%s5] sm:$0xf]
        %v528 = vld [vmem:[%s5 + $0x4] sm:$0xf]
        %v529 = vld [vmem:[%s5 + $0x8] sm:$0xf]
        %v530 = vld [vmem:[%s5 + $0xc] sm:$0xf]
        %v531 = vld [vmem:[%s5 + $0x10] sm:$0xf]
        %v532 = vld [vmem:[%s5 + $0x14] sm:$0xf]
        %v533 = vld [vmem:[%s5 + $0x18] sm:$0xf]
        %v534 = vld [vmem:[%s5 + $0x1c] sm:$0xf]
        %v535 = vld [vmem:[%s5 + $0x20] sm:$0xf]
        %v536 = vld [vmem:[%s5 + $0x24] sm:$0xf]
        %v537 = vld [vmem:[%s5 + $0x28] sm:$0xf]
        %v538 = vld [vmem:[%s5 + $0x2c] sm:$0xf]
        %v539 = vld [vmem:[%s5 + $0x30] sm:$0xf]
        %v540 = vld [vmem:[%s5 + $0x34] sm:$0xf]
        %v541 = vld [vmem:[%s5 + $0x38] sm:$0xf]
        %v542 = vld [vmem:[%s5 + $0x3c] sm:$0xf]
        %v543 = vld [vmem:[%s6] sm:$0x1]
        %v545 = vlaneseq
        %v546 = vshrl.u32 %v545, 7
        %v547 = vsub.s32 0, %v546
        %v548 = vrot.slane %v543, %v547
        %v566 = vunpack.c.l.b16 %v527
        %v567 = vunpack.c.l.b16 %v528
        %v568 = vunpack.c.l.b16 %v529
        %v569 = vunpack.c.l.b16 %v530
        %v570 = vunpack.c.l.b16 %v531
        %v571 = vunpack.c.l.b16 %v532
        %v572 = vunpack.c.l.b16 %v533
        %v573 = vunpack.c.l.b16 %v534
        %v574 = vunpack.c.l.b16 %v535
        %v575 = vunpack.c.l.b16 %v536
        %v576 = vunpack.c.l.b16 %v537
        %v577 = vunpack.c.l.b16 %v538
        %v578 = vunpack.c.l.b16 %v539
        %v579 = vunpack.c.l.b16 %v540
        %v580 = vunpack.c.l.b16 %v541
        %v581 = vunpack.c.l.b16 %v542
        %v582 = vpack.c.b16 %v567, %v566
        %v583 = vpack.c.b16 %v569, %v568
        %v584 = vpack.c.b16 %v571, %v570
        %v585 = vpack.c.b16 %v573, %v572
        %v586 = vpack.c.b16 %v575, %v574
        %v587 = vpack.c.b16 %v577, %v576
        %v588 = vpack.c.b16 %v579, %v578
        %v589 = vpack.c.b16 %v581, %v580
        %598 = vmatprep.subr.bf16.mxu0 0
        %599 = vmatpush1.bf16.msra.mxu0 %v582
        %600 = vmatprep.subr.bf16.mxu0 0
        %601 = vmatpush1.bf16.msra.mxu0 %v583
        %602 = vmatprep.subr.bf16.mxu0 0
        %603 = vmatpush1.bf16.msra.mxu0 %v584
        %604 = vmatprep.subr.bf16.mxu0 0
        %605 = vmatpush1.bf16.msra.mxu0 %v585
        %606 = vmatprep.subr.bf16.mxu0 0
        %607 = vmatpush1.bf16.msra.mxu0 %v586
        %608 = vmatprep.subr.bf16.mxu0 0
        %609 = vmatpush1.bf16.msra.mxu0 %v587
        %610 = vmatprep.subr.bf16.mxu0 0
        %611 = vmatpush1.bf16.msra.mxu0 %v588
        %612 = vmatprep.subr.bf16.mxu0 0
        %613 = vmatpush1.bf16.msra.mxu0 %v589
        %614 = vmatprep.subr.bf16.mxu0 0
        %615 = vmatpush1.bf16.msra.mxu0 0
        %616 = vmatprep.subr.bf16.mxu0 0
        %617 = vmatpush1.bf16.msra.mxu0 0
        %618 = vmatprep.subr.bf16.mxu0 0
        %619 = vmatpush1.bf16.msra.mxu0 0
        %620 = vmatprep.subr.bf16.mxu0 0
        %621 = vmatpush1.bf16.msra.mxu0 0
        %622 = vmatprep.subr.bf16.mxu0 0
        %623 = vmatpush1.bf16.msra.mxu0 0
        %624 = vmatprep.subr.bf16.mxu0 0
        %625 = vmatpush1.bf16.msra.mxu0 0
        %626 = vmatprep.subr.bf16.mxu0 0
        %627 = vmatpush1.bf16.msra.mxu0 0
        %628 = vmatprep.subr.bf16.mxu0 0
        %629 = vmatpush1.bf16.msra.mxu0 0
        %630 = vmatprep.mubr.bf16.mxu0 0
        %631 = vmatmul.mubr.bf16.gmra.mrb[0].mxu0 %v525
        %v632 = vpop.f32.mrb[0].mxu0
        %v633 = vadd.f32 %v548, %v632
        %v634 = vpop.f32.mrb[0].mxu0
        %v635 = vpop.f32.mrb[0].mxu0
        %v636 = vadd.f32 %v548, %v635
        %v637 = vpop.f32.mrb[0].mxu0
        %638 = vmatprep.mubr.bf16.mxu0 0
        %639 = vmatmul.mubr.bf16.gmra.mrb[0].mxu0 %v526
        %v640 = vpop.f32.mrb[0].mxu0
        %v641 = vadd.f32 %v548, %v640
        %v642 = vpop.f32.mrb[0].mxu0
        %v643 = vpop.f32.mrb[0].mxu0
        %v644 = vadd.f32 %v548, %v643
        %v645 = vpop.f32.mrb[0].mxu0
        %646 = vdwg.mxu0
        %v647 = vmax.f32 %v633, 0.0
        %v648 = vmax.f32 %v636, 0.0
        %v649 = vmax.f32 %v641, 0.0
        %v650 = vmax.f32 %v644, 0.0
        %v651 = vld [vmem:[%s7] sm:$0x1]
        %v653 = vlaneseq
        %v654 = vshrl.u32 %v653, 7
        %v655 = vsub.s32 0, %v654
        %v656 = vrot.slane %v651, %v655
        %v658 = vmul.f32 %v647, %v656
        %v659 = vmul.f32 %v648, %v656
        %v660 = vmul.f32 %v649, %v656
        %v661 = vmul.f32 %v650, %v656
        %v662 = vsel %vm465, %v658, 0.0
        %663 = vadd.xlane.f32.xlu0 %v662
        %v664 = vpop.xlane.xlu0 %663
        %v665 = vsel %vm465, %v659, 0.0
        %666 = vadd.xlane.f32.xlu0 %v665
        %v667 = vpop.xlane.xlu0 %666
        %v668 = vsel %vm465, %v660, 0.0
        %669 = vadd.xlane.f32.xlu0 %v668
        %v670 = vpop.xlane.xlu0 %669
        %v671 = vsel %vm465, %v661, 0.0
        %672 = vadd.xlane.f32.xlu0 %v671
        %v673 = vpop.xlane.xlu0 %672
        %v674 = vld [vmem:[#allocation2] sm:$0x1]
        %v676 = vlaneseq
        %v677 = vshrl.u32 %v676, 7
        %v678 = vsub.s32 0, %v677
        %v679 = vrot.slane %v674, %v678
        %v681 = vadd.f32 %v664, %v679
        %v682 = vadd.f32 %v667, %v679
        %v683 = vadd.f32 %v670, %v679
        %v684 = vadd.f32 %v673, %v679
        %v685 = vmax.f32 %v681, 0.0
        %v686 = vmax.f32 %v682, 0.0
        %v687 = vmax.f32 %v683, 0.0
        %v688 = vmax.f32 %v684, 0.0
        %693 = vset.pattern.permute.xlu0 0
        %694 = vperm.xlu0 %693, %v685
        %v695 = vpop.permute.xlu0 %694
        %696 = vset.pattern.permute.xlu0 0
        %697 = vperm.xlu0 %696, %v686
        %v698 = vpop.permute.xlu0 %697
        %699 = vset.pattern.permute.xlu0 0
        %700 = vperm.xlu0 %699, %v687
        %v701 = vpop.permute.xlu0 %700
        %702 = vset.pattern.permute.xlu0 0
        %703 = vperm.xlu0 %702, %v688
        %v704 = vpop.permute.xlu0 %703
        %v705 = vlaneseq
        %v706 = vand.u32 %v705, 127
        %v707 = vlaneseq
        %v708 = vshrl.u32 %v707, 7
        %v709 = vsub.s32 %v706, %v708
        %v710 = vrot.slane %v695, %v709
        %v711 = vadd.s32 %v706, 4294967288
        %v712 = vlaneseq
        %v713 = vshrl.u32 %v712, 7
        %v714 = vsub.s32 %v711, %v713
        %v715 = vrot.slane %v698, %v714
        %vm716 = vcmask 130112
        %v717 = vsel %vm716, %v715, %v710
        %v718 = vadd.s32 %v706, 4294967280
        %v719 = vlaneseq
        %v720 = vshrl.u32 %v719, 7
        %v721 = vsub.s32 %v718, %v720
        %v722 = vrot.slane %v701, %v721
        %vm723 = vcmask 195712
        %v724 = vsel %vm723, %v722, %v717
        %v725 = vadd.s32 %v706, 4294967272
        %v726 = vlaneseq
        %v727 = vshrl.u32 %v726, 7
        %v728 = vsub.s32 %v725, %v727
        %v729 = vrot.slane %v704, %v728
        %vm730 = vcmask 261312
        %v731 = vsel %vm730, %v729, %v724
        %vm733 = vcmask 253952
        %734 = vst.msk [vmem:[%s327] sm:$0x1] %vm733, %v731
        %s735 = sand.u32 %s227, 1
        %s736 = scalar_lea.sflag [#allocation4], %s735
        %s737 = sand.u32 %s227, 1
        %s738 = scalar_lea.vmem [#allocation3], %s737
        // Predicated region
        $region57: #{tpu_custom_call.1} parent=55 // pred_check
          %p739 = pneg %p237
        $region58: #{tpu_custom_call.1} parent=55 // pred_check_branch
          %741 = sbr.rel (%p739) target = $region60
        $region59: #{tpu_custom_call.1} parent=55 // pred_region
          %s743 = ssub.s32 16, 16
          %744 = vsyncadd %s736, %s743
          %s745 = smul.addr %s25, 16
          %s746 = scalar_lea.hbm %s9, %s745
          %s748 = sshll.u32 %s738, 4
          %s749 = int_to_ptr.vmem [resolvable:$true] %s748
          %751 = dma.vmem_to_hbm [thread:$0]  %s749, 16, %s746, %s736
        $region60: #{tpu_custom_call.1} parent=55 // pred_fallthru
          _
      $region56: #{tpu_custom_call.1} parent=5 // pred_fallthru
        _
      %p752 = scmp.le.s32.totalorder 2, %s20
      // Predicated region
      $region61: #{tpu_custom_call.1} parent=5 // pred_check
        %p753 = pneg %p752
      $region62: #{tpu_custom_call.1} parent=5 // pred_check_branch
        %755 = sbr.rel (%p753) target = $region64
      $region63: #{tpu_custom_call.1} parent=5 // pred_region
        %s756 = ssub.s32 %s20, 2
        // Predicated region
        $region65: #{tpu_custom_call.1} parent=63 // pred_check
          %p757 = pneg %p243
        $region66: #{tpu_custom_call.1} parent=63 // pred_check_branch
          %759 = sbr.rel (%p757) target = $region68
        $region67: #{tpu_custom_call.1} parent=63 // pred_region
          %s760 = sand.u32 %s228, 1
          %s761 = scalar_lea.sflag [#allocation4], %s760
          %s762 = sand.u32 %s228, 1
          %s763 = scalar_lea.vmem [#allocation3], %s762
          %764 = dma.done %s761, 16
        $region68: #{tpu_custom_call.1} parent=63 // pred_fallthru
          _
      $region64: #{tpu_custom_call.1} parent=5 // pred_fallthru
        _
    $region6: #{tpu_custom_call.1} parent=1 // loop_footer
      %s24 = sadd.s32 1, %s20
    $region7: #{tpu_custom_call.1} parent=1 // loop_footer_branch
      %19 = sbr.rel target = $region3
    $region8: #{tpu_custom_call.1} parent=1 // loop_exit
      _
    %765 = vsyncpa [#allocation4], 1
    %s766 = scalar_lea.sflag [#allocation4], 1
    %767 = vsyncpa %s766, 1

</llo_original>
